<compile_context>
chip_gen: v7x
topology: tpu7x:2x2x1
jax: 0.10.0
libtpu: 0.0.40
codegen_flags: <defaults>
</compile_context>

<pallas_src>
import jax
import jax.numpy as jnp
from jax import lax
from jax.experimental import pallas as pl
from jax.experimental.pallas import tpu as pltpu


def _round_up(n, m):
    return ((n + m - 1) // m) * m


def _vmem_limit_bytes():
    """Generation-aware scoped-VMEM limit: ~32 MiB on v7x (64 MiB physical),
    64 MiB on v5e/v6e (128 MiB physical)."""
    cap = 128 * 1024 * 1024
    try:
        info = pltpu.get_tpu_info()
        cap = int(getattr(info, "vmem_capacity_bytes", cap) or cap)
    except Exception:  # not on TPU / API mismatch -> conservative default
        pass
    return int(min(64 * 1024 * 1024, cap // 2))


def _segment_matrices(n1, n2):
    """Static block-diagonal (out_dim, out_dim) f32 matrices.

    o @ m_avg  -> per-lane mean of that lane's segment (reduce + broadcast in
                  one tiny MXU matmul; no XLU reduction, no jnp.where select).
    e @ m_ones -> per-lane sum of that lane's segment (softmax denominator).
    """
    d = n1 + n2
    seg1 = jnp.arange(d) < n1
    same = (seg1[:, None] == seg1[None, :]).astype(jnp.float32)
    inv = jnp.where(seg1, 1.0 / n1, 1.0 / n2).astype(jnp.float32)
    return same * inv[None, :], same


def _actor_kernel(x_ref, w1_ref, b1_ref, w2_ref, b2_ref, wo_ref, bo_ref,
                  mavg_ref, mones_ref, out_ref):
    # --- MLP trunk: bf16 operands on the MXU, f32 accumulation. --------------
    xb = x_ref[...].astype(jnp.bfloat16)
    h1 = jnp.dot(xb, w1_ref[...], preferred_element_type=jnp.float32) + b1_ref[...]
    h1 = jnp.maximum(h1, 0.0).astype(jnp.bfloat16)
    h2 = jnp.dot(h1, w2_ref[...], preferred_element_type=jnp.float32) + b2_ref[...]
    h2 = jnp.maximum(h2, 0.0).astype(jnp.bfloat16)
    # Single fused head matmul (128 -> n1 + n2).
    o = jnp.dot(h2, wo_ref[...], preferred_element_type=jnp.float32) + bo_ref[...]

    # --- Segment-wise LayerNorm(eps=0, no affine) + softmax. ------------------
    # Per-segment mean / variance / softmax denominator via tiny block-diagonal
    # f32 matmuls: reduce and broadcast in one op, keeping the tail off the XLU.
    m_avg = mavg_ref[...]
    mu = jnp.dot(o, m_avg, preferred_element_type=jnp.float32)
    c = o - mu
    var = jnp.dot(c * c, m_avg, preferred_element_type=jnp.float32)
    ln = c * lax.rsqrt(var)                       # eps = 0, faithful to the module
    # After a no-affine eps=0 LayerNorm, |ln| <= sqrt(D-1) < 4 -> exp cannot
    # overflow, so the usual max-subtraction is skipped.
    e = jnp.exp(ln)
    denom = jnp.dot(e, mones_ref[...], preferred_element_type=jnp.float32)
    out_ref[...] = e * pl.reciprocal(denom, approx=True)


def actor_forward(x, params, *, block_b=None):
    """x: (B, input_dim) f32.  Returns (B, wait_num_max + lag_t_max) f32."""
    (w1, b1, w2, b2, wo1, bo1, wo2, bo2) = params
    n1, n2 = wo1.shape[1], wo2.shape[1]
    out_dim = n1 + n2
    B, in_dim = x.shape
    hidden = w1.shape[1]

    # Weights to bf16 once here (MXU-native, halves weight DMA/VMEM); biases
    # stay f32 so the add happens on the f32 accumulator.  Head layers fused.
    w1b = w1.astype(jnp.bfloat16)
    w2b = w2.astype(jnp.bfloat16)
    wo = jnp.concatenate([wo1, wo2], axis=1).astype(jnp.bfloat16)
    bo = jnp.concatenate([bo1, bo2], axis=1)
    m_avg, m_ones = _segment_matrices(n1, n2)

    vmem_limit = _vmem_limit_bytes()
    default_tb = 8192 if vmem_limit >= 64 * 1024 * 1024 else 4096
    tb = int(block_b) if block_b is not None else default_tb

    operands = (x, w1b, b1, w2b, b2, wo, bo, m_avg, m_ones)

    single_block_max = tb if block_b is not None else min(tb, 1024)
    if B <= single_block_max:
        # Small batch: everything in VMEM, no grid -> no per-step overhead.
        return pl.pallas_call(
            _actor_kernel,
            out_shape=jax.ShapeDtypeStruct((B, out_dim), jnp.float32),
            compiler_params=pltpu.CompilerParams(vmem_limit_bytes=vmem_limit),
        )(*operands)

    # Large batch: 1-D "parallel" batch grid, resident weights, double-buffered
    # x / out tiles.  No wrapper-side padding: Pallas handles the ragged last
    # block (overhang rows are computed on garbage but never written back, and
    # every row is independent).  Tile clamped so the grid has >= 2 steps,
    # keeping both v7x TensorCores busy.
    tb = min(tb, max(128, _round_up(pl.cdiv(B, 2), 128)))
    grid = (pl.cdiv(B, tb),)
    const = lambda i: (0, 0)
    return pl.pallas_call(
        _actor_kernel,
        out_shape=jax.ShapeDtypeStruct((B, out_dim), jnp.float32),
        grid_spec=pltpu.PrefetchScalarGridSpec(
            num_scalar_prefetch=0,
            grid=grid,
            in_specs=[
                pl.BlockSpec((tb, in_dim), lambda i: (i, 0)),
                pl.BlockSpec((in_dim, hidden), const),
                pl.BlockSpec((1, hidden), const),
                pl.BlockSpec((hidden, hidden), const),
                pl.BlockSpec((1, hidden), const),
                pl.BlockSpec((hidden, out_dim), const),
                pl.BlockSpec((1, out_dim), const),
                pl.BlockSpec((out_dim, out_dim), const),
                pl.BlockSpec((out_dim, out_dim), const),
            ],
            out_specs=pl.BlockSpec((tb, out_dim), lambda i: (i, 0)),
        ),
        compiler_params=pltpu.CompilerParams(
            dimension_semantics=("parallel",),       # v7x: shard batch over both TCs
            vmem_limit_bytes=vmem_limit,             # 64 MiB on v5e/v6e, 32 MiB on v7x
        ),
    )(*operands)


def init_actor_params(key, input_dim, wait_num_max, lag_t_max, hidden=128):
    """PyTorch-style Linear init: U(-1/sqrt(fan_in), 1/sqrt(fan_in)).

    Weights stored transposed relative to torch (in_features, out_features) so
    the kernel computes x @ W directly; biases are (1, out) for lane-major
    broadcasting.
    """
    def linear(k, fan_in, fan_out):
        kw, kb = jax.random.split(k)
        bound = 1.0 / jnp.sqrt(jnp.float32(fan_in))
        w = jax.random.uniform(kw, (fan_in, fan_out), jnp.float32, -bound, bound)
        b = jax.random.uniform(kb, (1, fan_out), jnp.float32, -bound, bound)
        return w, b

    k1, k2, k3, k4 = jax.random.split(key, 4)
    w1, b1 = linear(k1, input_dim, hidden)
    w2, b2 = linear(k2, hidden, hidden)
    wo1, bo1 = linear(k3, hidden, wait_num_max)
    wo2, bo2 = linear(k4, hidden, lag_t_max)
    return (w1, b1, w2, b2, wo1, bo1, wo2, bo2)


def actor_reference(x, params):
    """Pure-JAX f32 reference (torch semantics) for correctness checking."""
    (w1, b1, w2, b2, wo1, bo1, wo2, bo2) = params
    h1 = jnp.maximum(x @ w1 + b1, 0.0)
    h2 = jnp.maximum(h1 @ w2 + b2, 0.0)

    def head(w, b):
        o = h2 @ w + b
        mu = jnp.mean(o, axis=-1, keepdims=True)
        var = jnp.mean((o - mu) ** 2, axis=-1, keepdims=True)
        ln = (o - mu) / jnp.sqrt(var)
        return jax.nn.softmax(ln, axis=-1)

    return jnp.concatenate([head(wo1, bo1), head(wo2, bo2)], axis=1)


if __name__ == "__main__":
    # Small shapes consistent with the module's constructor.
    B = 8                # batch
    INPUT_DIM = 32       # input_dimension
    WAIT_NUM_MAX = 16    # wait_num_max
    LAG_T_MAX = 16       # lag_t_max
    # output_dimension / output_layer are unused by forward() -> omitted.

    key = jax.random.PRNGKey(0)
    kx, kp, kx2 = jax.random.split(key, 3)
    params = init_actor_params(kp, INPUT_DIM, WAIT_NUM_MAX, LAG_T_MAX)

    # ---- small-batch (grid-free) path --------------------------------------
    x = jax.random.normal(kx, (B, INPUT_DIM), jnp.float32)
    out = jax.block_until_ready(actor_forward(x, params))
    ref = actor_reference(x, params)
    assert out.shape == (B, WAIT_NUM_MAX + LAG_T_MAX), out.shape
    # bf16 MXU matmuls + approx reciprocal -> ~1e-2 tolerance vs f32 reference.
    assert jnp.allclose(out, ref, atol=1e-2, rtol=1e-2), float(
        jnp.max(jnp.abs(out - ref)))
    # Each softmax head sums to ~1 per row -> full output rows sum to ~2.
    assert jnp.allclose(jnp.sum(out, axis=1), 2.0, atol=1e-2)

    # ---- batched (1-D parallel grid) path incl. ragged last block (no pad) --
    B2 = 200
    x2 = jax.random.normal(kx2, (B2, INPUT_DIM), jnp.float32)
    out2 = jax.block_until_ready(actor_forward(x2, params, block_b=128))
    ref2 = actor_reference(x2, params)
    assert out2.shape == (B2, WAIT_NUM_MAX + LAG_T_MAX), out2.shape
    assert jnp.allclose(out2, ref2, atol=1e-2, rtol=1e-2), float(
        jnp.max(jnp.abs(out2 - ref2)))

    print("KERNEL_OK")
</pallas_src>

<mosaic_0001>
module attributes {stable_mosaic.version = 11 : i64} {
  func.func @_actor_kernel(%arg0: memref<8x32xf32, #tpu.memory_space<vmem>>, %arg1: memref<32x128xbf16, #tpu.memory_space<vmem>>, %arg2: memref<1x128xf32, #tpu.memory_space<vmem>>, %arg3: memref<128x128xbf16, #tpu.memory_space<vmem>>, %arg4: memref<1x128xf32, #tpu.memory_space<vmem>>, %arg5: memref<128x32xbf16, #tpu.memory_space<vmem>>, %arg6: memref<1x32xf32, #tpu.memory_space<vmem>>, %arg7: memref<32x32xf32, #tpu.memory_space<vmem>>, %arg8: memref<32x32xf32, #tpu.memory_space<vmem>>, %arg9: memref<8x32xf32, #tpu.memory_space<vmem>>) attributes {dimension_semantics = [], scalar_prefetch = 0 : i64, scratch_operands = 0 : i64, tpu.core_type = #tpu.core_type<tc>} {
    %c0 = arith.constant 0 : index
    %c0_0 = arith.constant 0 : index
    %0 = vector.load %arg0[%c0, %c0_0] : memref<8x32xf32, #tpu.memory_space<vmem>>, vector<8x32xf32>
    %1 = arith.truncf %0 : vector<8x32xf32> to vector<8x32xbf16>
    %c0_1 = arith.constant 0 : index
    %c0_2 = arith.constant 0 : index
    %2 = vector.load %arg1[%c0_1, %c0_2] : memref<32x128xbf16, #tpu.memory_space<vmem>>, vector<32x128xbf16>
    %cst = arith.constant dense<0.000000e+00> : vector<8x128xf32>
    %3 = tpu.matmul %1, %2, %cst {dimension_numbers = #tpu.dot_dimension_numbers<[1], [0], [0], [1], [0, 0, 1, 1], [], []>} : vector<8x32xbf16>, vector<32x128xbf16>, vector<8x128xf32> -> vector<8x128xf32>
    %c0_3 = arith.constant 0 : index
    %c0_4 = arith.constant 0 : index
    %4 = vector.load %arg2[%c0_3, %c0_4] : memref<1x128xf32, #tpu.memory_space<vmem>>, vector<1x128xf32>
    %5 = vector.broadcast %4 : vector<1x128xf32> to vector<8x128xf32>
    %6 = arith.addf %3, %5 : vector<8x128xf32>
    %cst_5 = arith.constant 0.000000e+00 : f32
    %7 = vector.broadcast %cst_5 : f32 to vector<8x128xf32>
    %8 = arith.maximumf %6, %7 : vector<8x128xf32>
    %9 = arith.truncf %8 : vector<8x128xf32> to vector<8x128xbf16>
    %c0_6 = arith.constant 0 : index
    %c0_7 = arith.constant 0 : index
    %10 = vector.load %arg3[%c0_6, %c0_7] : memref<128x128xbf16, #tpu.memory_space<vmem>>, vector<128x128xbf16>
    %cst_8 = arith.constant dense<0.000000e+00> : vector<8x128xf32>
    %11 = tpu.matmul %9, %10, %cst_8 {dimension_numbers = #tpu.dot_dimension_numbers<[1], [0], [0], [1], [0, 0, 1, 1], [], []>} : vector<8x128xbf16>, vector<128x128xbf16>, vector<8x128xf32> -> vector<8x128xf32>
    %c0_9 = arith.constant 0 : index
    %c0_10 = arith.constant 0 : index
    %12 = vector.load %arg4[%c0_9, %c0_10] : memref<1x128xf32, #tpu.memory_space<vmem>>, vector<1x128xf32>
    %13 = vector.broadcast %12 : vector<1x128xf32> to vector<8x128xf32>
    %14 = arith.addf %11, %13 : vector<8x128xf32>
    %cst_11 = arith.constant 0.000000e+00 : f32
    %15 = vector.broadcast %cst_11 : f32 to vector<8x128xf32>
    %16 = arith.maximumf %14, %15 : vector<8x128xf32>
    %17 = arith.truncf %16 : vector<8x128xf32> to vector<8x128xbf16>
    %c0_12 = arith.constant 0 : index
    %c0_13 = arith.constant 0 : index
    %18 = vector.load %arg5[%c0_12, %c0_13] : memref<128x32xbf16, #tpu.memory_space<vmem>>, vector<128x32xbf16>
    %cst_14 = arith.constant dense<0.000000e+00> : vector<8x32xf32>
    %19 = tpu.matmul %17, %18, %cst_14 {dimension_numbers = #tpu.dot_dimension_numbers<[1], [0], [0], [1], [0, 0, 1, 1], [], []>} : vector<8x128xbf16>, vector<128x32xbf16>, vector<8x32xf32> -> vector<8x32xf32>
    %c0_15 = arith.constant 0 : index
    %c0_16 = arith.constant 0 : index
    %20 = vector.load %arg6[%c0_15, %c0_16] : memref<1x32xf32, #tpu.memory_space<vmem>>, vector<1x32xf32>
    %21 = vector.broadcast %20 : vector<1x32xf32> to vector<8x32xf32>
    %22 = arith.addf %19, %21 : vector<8x32xf32>
    %c0_17 = arith.constant 0 : index
    %c0_18 = arith.constant 0 : index
    %23 = vector.load %arg7[%c0_17, %c0_18] : memref<32x32xf32, #tpu.memory_space<vmem>>, vector<32x32xf32>
    %cst_19 = arith.constant dense<0.000000e+00> : vector<8x32xf32>
    %24 = tpu.matmul %22, %23, %cst_19 {dimension_numbers = #tpu.dot_dimension_numbers<[1], [0], [0], [1], [0, 0, 1, 1], [], []>} : vector<8x32xf32>, vector<32x32xf32>, vector<8x32xf32> -> vector<8x32xf32>
    %25 = arith.subf %22, %24 : vector<8x32xf32>
    %26 = arith.mulf %25, %25 : vector<8x32xf32>
    %cst_20 = arith.constant dense<0.000000e+00> : vector<8x32xf32>
    %27 = tpu.matmul %26, %23, %cst_20 {dimension_numbers = #tpu.dot_dimension_numbers<[1], [0], [0], [1], [0, 0, 1, 1], [], []>} : vector<8x32xf32>, vector<32x32xf32>, vector<8x32xf32> -> vector<8x32xf32>
    %28 = math.rsqrt %27 : vector<8x32xf32>
    %29 = arith.mulf %25, %28 : vector<8x32xf32>
    %30 = math.exp %29 : vector<8x32xf32>
    %c0_21 = arith.constant 0 : index
    %c0_22 = arith.constant 0 : index
    %31 = vector.load %arg8[%c0_21, %c0_22] : memref<32x32xf32, #tpu.memory_space<vmem>>, vector<32x32xf32>
    %cst_23 = arith.constant dense<0.000000e+00> : vector<8x32xf32>
    %32 = tpu.matmul %30, %31, %cst_23 {dimension_numbers = #tpu.dot_dimension_numbers<[1], [0], [0], [1], [0, 0, 1, 1], [], []>} : vector<8x32xf32>, vector<32x32xf32>, vector<8x32xf32> -> vector<8x32xf32>
    %33 = tpu.reciprocal %32 {approx = true} : vector<8x32xf32> -> vector<8x32xf32>
    %34 = arith.mulf %30, %33 : vector<8x32xf32>
    %c0_24 = arith.constant 0 : index
    %c0_25 = arith.constant 0 : index
    %35 = vector.load %arg9[%c0_24, %c0_25] : memref<8x32xf32, #tpu.memory_space<vmem>>, vector<8x32xf32>
    tpu.vector_store %arg9[%c0_24, %c0_25], %34 {strides = array<i32>} : memref<8x32xf32, #tpu.memory_space<vmem>>, vector<8x32xf32>,
    return
  }
}

</mosaic_0001>

<llo_original>
// kernel: tpu_custom_call.1
$region0: #{tpu_custom_call.1}
  #allocation0 [shape = 'u32[]', space=smem, size = 0x4, offset = 0x4, fixed_abs, tag = 'smem constant byte address 0x4 - core index']
  #allocation1 [shape = 'u32[144,128]{1,0:T(1,128)}', space=vmem, size = 0x12000, scoped, tag = 'internal scratch']
  %s0 = inlined_call_operand.hbm [shape: f32[8,32], index: 0, kind: input, shape index: {}]
  %s1 = inlined_call_operand.hbm [shape: bf16[32,128], index: 1, kind: input, shape index: {}]
  %s2 = inlined_call_operand.hbm [shape: f32[1,128], index: 2, kind: input, shape index: {}]
  %s3 = inlined_call_operand.hbm [shape: bf16[128,128], index: 3, kind: input, shape index: {}]
  %s4 = inlined_call_operand.hbm [shape: f32[1,128], index: 4, kind: input, shape index: {}]
  %s5 = inlined_call_operand.hbm [shape: bf16[128,32], index: 5, kind: input, shape index: {}]
  %s6 = inlined_call_operand.hbm [shape: f32[1,32], index: 6, kind: input, shape index: {}]
  %s7 = inlined_call_operand.hbm [shape: f32[32,32], index: 7, kind: input, shape index: {}]
  %s8 = inlined_call_operand.hbm [shape: f32[32,32], index: 8, kind: input, shape index: {}]
  %s9 = inlined_call_operand.hbm [shape: f32[8,32], index: 9, kind: output, shape index: {}]
  %s10 = sld [smem:[#allocation0]]
  $region82: #{tpu_custom_call.1} parent=0
    _
  %s12 = ssub.s32 1, %s10
  %s13 = scalar_select 0, %s12, %s10
  $region1: #{tpu_custom_call.1} parent=0
    #allocation2 [shape = 'u8[4096]{0}', space=vmem, size = 0x1000, scoped, tag = 'input window, operand 0, single buffered']
    #allocation3 [shape = 's32[1]{0}', space=sflag, size = 0x4, scoped, tag = 'scoped memory for tpu_custom_call.1']
    #allocation4 [shape = 's32[1]{0}', space=sflag, size = 0x4, scoped, tag = 'scoped memory for tpu_custom_call.1']
    #allocation5 [shape = 'u8[8192]{0}', space=vmem, size = 0x2000, scoped, tag = 'input window, operand 1, single buffered']
    #allocation6 [shape = 's32[1]{0}', space=sflag, size = 0x4, scoped, tag = 'scoped memory for tpu_custom_call.1']
    #allocation7 [shape = 'u8[512]{0}', space=vmem, size = 0x400, scoped, tag = 'input window, operand 2, single buffered']
    #allocation8 [shape = 'u8[32768]{0}', space=vmem, size = 0x8000, scoped, tag = 'input window, operand 3, single buffered']
    #allocation9 [shape = 's32[1]{0}', space=sflag, size = 0x4, scoped, tag = 'scoped memory for tpu_custom_call.1']
    #allocation10 [shape = 'u8[512]{0}', space=vmem, size = 0x400, scoped, tag = 'input window, operand 4, single buffered']
    #allocation11 [shape = 'u8[32768]{0}', space=vmem, size = 0x8000, scoped, tag = 'input window, operand 5, single buffered']
    #allocation12 [shape = 's32[1]{0}', space=sflag, size = 0x4, scoped, tag = 'scoped memory for tpu_custom_call.1']
    #allocation13 [shape = 'u8[512]{0}', space=vmem, size = 0x400, scoped, tag = 'input window, operand 6, single buffered']
    #allocation14 [shape = 'u8[16384]{0}', space=vmem, size = 0x4000, scoped, tag = 'input window, operand 7, single buffered']
    #allocation15 [shape = 's32[1]{0}', space=sflag, size = 0x4, scoped, tag = 'scoped memory for tpu_custom_call.1']
    #allocation16 [shape = 'u8[16384]{0}', space=vmem, size = 0x4000, scoped, tag = 'input window, operand 8, single buffered']
    #allocation17 [shape = 'u8[4096]{0}', space=vmem, size = 0x1000, scoped, tag = 'output window, operand 0, single buffered']
    %14 = vsyncpa [#allocation3], 0
    %15 = vsyncpa [#allocation6], 0
    %16 = vsyncpa [#allocation9], 0
    %17 = vsyncpa [#allocation12], 0
    %18 = vsyncpa [#allocation15], 0
    %19 = vsyncpa [#allocation4], 0
    // Predicated region
    $region2: #{tpu_custom_call.1} parent=1 // pred_check
      _
    $region3: #{tpu_custom_call.1} parent=1 // pred_check_branch
      %21 = sbr.rel (0) target = $region5
    $region4: #{tpu_custom_call.1} parent=1 // pred_region
      %s23 = ssub.s32 128, 128
      %24 = vsyncadd [#allocation3], %s23
      %s26 = sshll.u32 [#allocation2], 4
      %s27 = int_to_ptr.vmem [resolvable:$true] %s26
      %29 = dma.hbm_to_vmem [thread:$0]  %s0, 128, %s27, [#allocation3]
    $region5: #{tpu_custom_call.1} parent=1 // pred_fallthru
      _
    // Predicated region
    $region6: #{tpu_custom_call.1} parent=1 // pred_check
      _
    $region7: #{tpu_custom_call.1} parent=1 // pred_check_branch
      %31 = sbr.rel (0) target = $region9
    $region8: #{tpu_custom_call.1} parent=1 // pred_region
      %s33 = ssub.s32 256, 256
      %34 = vsyncadd [#allocation6], %s33
      %s35 = sshll.u32 [#allocation5], 4
      %s36 = int_to_ptr.vmem [resolvable:$true] %s35
      %41 = dma.hbm_to_vmem [thread:$0]  %s1, 256, %s36, [#allocation6], 64, 64, 4
    $region9: #{tpu_custom_call.1} parent=1 // pred_fallthru
      _
    // Predicated region
    $region10: #{tpu_custom_call.1} parent=1 // pred_check
      _
    $region11: #{tpu_custom_call.1} parent=1 // pred_check_branch
      %43 = sbr.rel (0) target = $region13
    $region12: #{tpu_custom_call.1} parent=1 // pred_region
      %s45 = ssub.s32 16, 16
      %46 = vsyncadd [#allocation6], %s45
      %s48 = sshll.u32 [#allocation7], 4
      %s49 = int_to_ptr.vmem [resolvable:$true] %s48
      %51 = dma.hbm_to_vmem [thread:$0]  %s2, 16, %s49, [#allocation6]
    $region13: #{tpu_custom_call.1} parent=1 // pred_fallthru
      _
    // Predicated region
    $region14: #{tpu_custom_call.1} parent=1 // pred_check
      _
    $region15: #{tpu_custom_call.1} parent=1 // pred_check_branch
      %53 = sbr.rel (0) target = $region17
    $region16: #{tpu_custom_call.1} parent=1 // pred_region
      %s55 = ssub.s32 1024, 1024
      %56 = vsyncadd [#allocation9], %s55
      %s57 = sshll.u32 [#allocation8], 4
      %s58 = int_to_ptr.vmem [resolvable:$true] %s57
      %63 = dma.hbm_to_vmem [thread:$0]  %s3, 1024, %s58, [#allocation9], 64, 64, 4
    $region17: #{tpu_custom_call.1} parent=1 // pred_fallthru
      _
    // Predicated region
    $region18: #{tpu_custom_call.1} parent=1 // pred_check
      _
    $region19: #{tpu_custom_call.1} parent=1 // pred_check_branch
      %65 = sbr.rel (0) target = $region21
    $region20: #{tpu_custom_call.1} parent=1 // pred_region
      %s67 = ssub.s32 16, 16
      %68 = vsyncadd [#allocation9], %s67
      %s70 = sshll.u32 [#allocation10], 4
      %s71 = int_to_ptr.vmem [resolvable:$true] %s70
      %73 = dma.hbm_to_vmem [thread:$0]  %s4, 16, %s71, [#allocation9]
    $region21: #{tpu_custom_call.1} parent=1 // pred_fallthru
      _
    // Predicated region
    $region22: #{tpu_custom_call.1} parent=1 // pred_check
      _
    $region23: #{tpu_custom_call.1} parent=1 // pred_check_branch
      %75 = sbr.rel (0) target = $region25
    $region24: #{tpu_custom_call.1} parent=1 // pred_region
      %s77 = ssub.s32 1024, 1024
      %78 = vsyncadd [#allocation12], %s77
      %s79 = sshll.u32 [#allocation11], 4
      %s80 = int_to_ptr.vmem [resolvable:$true] %s79
      %85 = dma.hbm_to_vmem [thread:$0]  %s5, 1024, %s80, [#allocation12], 64, 64, 4
    $region25: #{tpu_custom_call.1} parent=1 // pred_fallthru
      _
    // Predicated region
    $region26: #{tpu_custom_call.1} parent=1 // pred_check
      _
    $region27: #{tpu_custom_call.1} parent=1 // pred_check_branch
      %87 = sbr.rel (0) target = $region29
    $region28: #{tpu_custom_call.1} parent=1 // pred_region
      %s89 = ssub.s32 16, 16
      %90 = vsyncadd [#allocation12], %s89
      %s92 = sshll.u32 [#allocation13], 4
      %s93 = int_to_ptr.vmem [resolvable:$true] %s92
      %95 = dma.hbm_to_vmem [thread:$0]  %s6, 16, %s93, [#allocation12]
    $region29: #{tpu_custom_call.1} parent=1 // pred_fallthru
      _
    // Predicated region
    $region30: #{tpu_custom_call.1} parent=1 // pred_check
      _
    $region31: #{tpu_custom_call.1} parent=1 // pred_check_branch
      %97 = sbr.rel (0) target = $region33
    $region32: #{tpu_custom_call.1} parent=1 // pred_region
      %s99 = ssub.s32 512, 512
      %100 = vsyncadd [#allocation15], %s99
      %s101 = sshll.u32 [#allocation14], 4
      %s102 = int_to_ptr.vmem [resolvable:$true] %s101
      %107 = dma.hbm_to_vmem [thread:$0]  %s7, 512, %s102, [#allocation15], 128, 128, 8
    $region33: #{tpu_custom_call.1} parent=1 // pred_fallthru
      _
    // Predicated region
    $region34: #{tpu_custom_call.1} parent=1 // pred_check
      _
    $region35: #{tpu_custom_call.1} parent=1 // pred_check_branch
      %109 = sbr.rel (0) target = $region37
    $region36: #{tpu_custom_call.1} parent=1 // pred_region
      %s111 = ssub.s32 512, 512
      %112 = vsyncadd [#allocation15], %s111
      %s113 = sshll.u32 [#allocation16], 4
      %s114 = int_to_ptr.vmem [resolvable:$true] %s113
      %119 = dma.hbm_to_vmem [thread:$0]  %s8, 512, %s114, [#allocation15], 128, 128, 8
    $region37: #{tpu_custom_call.1} parent=1 // pred_fallthru
      _
    // Predicated region
    $region38: #{tpu_custom_call.1} parent=1 // pred_check
      _
    $region39: #{tpu_custom_call.1} parent=1 // pred_check_branch
      %121 = sbr.rel (0) target = $region41
    $region40: #{tpu_custom_call.1} parent=1 // pred_region
      %122 = dma.done [#allocation3], 128
    $region41: #{tpu_custom_call.1} parent=1 // pred_fallthru
      _
    // Predicated region
    $region42: #{tpu_custom_call.1} parent=1 // pred_check
      _
    $region43: #{tpu_custom_call.1} parent=1 // pred_check_branch
      %124 = sbr.rel (0) target = $region45
    $region44: #{tpu_custom_call.1} parent=1 // pred_region
      %125 = dma.done [#allocation6], 256
    $region45: #{tpu_custom_call.1} parent=1 // pred_fallthru
      _
    // Predicated region
    $region46: #{tpu_custom_call.1} parent=1 // pred_check
      _
    $region47: #{tpu_custom_call.1} parent=1 // pred_check_branch
      %127 = sbr.rel (0) target = $region49
    $region48: #{tpu_custom_call.1} parent=1 // pred_region
      %128 = dma.done [#allocation6], 16
    $region49: #{tpu_custom_call.1} parent=1 // pred_fallthru
      _
    // Predicated region
    $region50: #{tpu_custom_call.1} parent=1 // pred_check
      _
    $region51: #{tpu_custom_call.1} parent=1 // pred_check_branch
      %130 = sbr.rel (0) target = $region53
    $region52: #{tpu_custom_call.1} parent=1 // pred_region
      %131 = dma.done [#allocation9], 1024
    $region53: #{tpu_custom_call.1} parent=1 // pred_fallthru
      _
    // Predicated region
    $region54: #{tpu_custom_call.1} parent=1 // pred_check
      _
    $region55: #{tpu_custom_call.1} parent=1 // pred_check_branch
      %133 = sbr.rel (0) target = $region57
    $region56: #{tpu_custom_call.1} parent=1 // pred_region
      %134 = dma.done [#allocation9], 16
    $region57: #{tpu_custom_call.1} parent=1 // pred_fallthru
      _
    // Predicated region
    $region58: #{tpu_custom_call.1} parent=1 // pred_check
      _
    $region59: #{tpu_custom_call.1} parent=1 // pred_check_branch
      %136 = sbr.rel (0) target = $region61
    $region60: #{tpu_custom_call.1} parent=1 // pred_region
      %137 = dma.done [#allocation12], 1024
    $region61: #{tpu_custom_call.1} parent=1 // pred_fallthru
      _
    // Predicated region
    $region62: #{tpu_custom_call.1} parent=1 // pred_check
      _
    $region63: #{tpu_custom_call.1} parent=1 // pred_check_branch
      %139 = sbr.rel (0) target = $region65
    $region64: #{tpu_custom_call.1} parent=1 // pred_region
      %140 = dma.done [#allocation12], 16
    $region65: #{tpu_custom_call.1} parent=1 // pred_fallthru
      _
    // Predicated region
    $region66: #{tpu_custom_call.1} parent=1 // pred_check
      _
    $region67: #{tpu_custom_call.1} parent=1 // pred_check_branch
      %142 = sbr.rel (0) target = $region69
    $region68: #{tpu_custom_call.1} parent=1 // pred_region
      %143 = dma.done [#allocation15], 512
    $region69: #{tpu_custom_call.1} parent=1 // pred_fallthru
      _
    // Predicated region
    $region70: #{tpu_custom_call.1} parent=1 // pred_check
      _
    $region71: #{tpu_custom_call.1} parent=1 // pred_check_branch
      %145 = sbr.rel (0) target = $region73
    $region72: #{tpu_custom_call.1} parent=1 // pred_region
      %146 = dma.done [#allocation15], 512
    $region73: #{tpu_custom_call.1} parent=1 // pred_fallthru
      _
    %v148 = vld [vmem:[#allocation2] sm:$0xff]
    %v149 = vpack.c.bf16 %v148, %v148
    %v150 = vld [vmem:[#allocation5] sm:$0xf]
    %v151 = vld [vmem:[#allocation5 + $0x4] sm:$0xf]
    %v152 = vld [vmem:[#allocation5 + $0x8] sm:$0xf]
    %v153 = vld [vmem:[#allocation5 + $0xc] sm:$0xf]
    %v154 = vld [vmem:[#allocation7] sm:$0x1]
    %v156 = vlaneseq
    %v157 = vshrl.u32 %v156, 7
    %v158 = vsub.s32 0, %v157
    %v159 = vrot.slane %v154, %v158
    %v165 = vunpack.c.l.b16 %v150
    %v166 = vunpack.c.l.b16 %v151
    %v167 = vunpack.c.l.b16 %v152
    %v168 = vunpack.c.l.b16 %v153
    %v169 = vpack.c.b16 %v166, %v165
    %v170 = vpack.c.b16 %v168, %v167
    %vm173 = vcmask 261120
    %v175 = vsel %vm173, %v149, 0
    %177 = vmatprep.subr.bf16.mxu0 0
    %178 = vmatpush1.bf16.msra.mxu0 %v169
    %179 = vmatprep.subr.bf16.mxu0 0
    %180 = vmatpush1.bf16.msra.mxu0 %v170
    %181 = vmatprep.subr.bf16.mxu0 0
    %182 = vmatpush1.bf16.msra.mxu0 0
    %183 = vmatprep.subr.bf16.mxu0 0
    %184 = vmatpush1.bf16.msra.mxu0 0
    %185 = vmatprep.subr.bf16.mxu0 0
    %186 = vmatpush1.bf16.msra.mxu0 0
    %187 = vmatprep.subr.bf16.mxu0 0
    %188 = vmatpush1.bf16.msra.mxu0 0
    %189 = vmatprep.subr.bf16.mxu0 0
    %190 = vmatpush1.bf16.msra.mxu0 0
    %191 = vmatprep.subr.bf16.mxu0 0
    %192 = vmatpush1.bf16.msra.mxu0 0
    %193 = vmatprep.subr.bf16.mxu0 0
    %194 = vmatpush1.bf16.msra.mxu0 0
    %195 = vmatprep.subr.bf16.mxu0 0
    %196 = vmatpush1.bf16.msra.mxu0 0
    %197 = vmatprep.subr.bf16.mxu0 0
    %198 = vmatpush1.bf16.msra.mxu0 0
    %199 = vmatprep.subr.bf16.mxu0 0
    %200 = vmatpush1.bf16.msra.mxu0 0
    %201 = vmatprep.subr.bf16.mxu0 0
    %202 = vmatpush1.bf16.msra.mxu0 0
    %203 = vmatprep.subr.bf16.mxu0 0
    %204 = vmatpush1.bf16.msra.mxu0 0
    %205 = vmatprep.subr.bf16.mxu0 0
    %206 = vmatpush1.bf16.msra.mxu0 0
    %207 = vmatprep.subr.bf16.mxu0 0
    %208 = vmatpush1.bf16.msra.mxu0 0
    %209 = vmatprep.mubr.bf16.mxu0 0
    %210 = vmatmul.mubr.bf16.gmra.mrb[0].mxu0 %v175
    %v211 = vpop.f32.mrb[0].mxu0
    %v212 = vadd.f32 %v159, %v211
    %v213 = vpop.f32.mrb[0].mxu0
    %v214 = vpop.f32.mrb[0].mxu0
    %v215 = vpop.f32.mrb[0].mxu0
    %216 = vdwg.mxu0
    %v217 = vmax.f32 %v212, 0.0
    %v218 = vpack.c.bf16 %v217, %v217
    %v219 = vld [vmem:[#allocation8] sm:$0xf]
    %v220 = vld [vmem:[#allocation8 + $0x4] sm:$0xf]
    %v221 = vld [vmem:[#allocation8 + $0x8] sm:$0xf]
    %v222 = vld [vmem:[#allocation8 + $0xc] sm:$0xf]
    %v223 = vld [vmem:[#allocation8 + $0x10] sm:$0xf]
    %v224 = vld [vmem:[#allocation8 + $0x14] sm:$0xf]
    %v225 = vld [vmem:[#allocation8 + $0x18] sm:$0xf]
    %v226 = vld [vmem:[#allocation8 + $0x1c] sm:$0xf]
    %v227 = vld [vmem:[#allocation8 + $0x20] sm:$0xf]
    %v228 = vld [vmem:[#allocation8 + $0x24] sm:$0xf]
    %v229 = vld [vmem:[#allocation8 + $0x28] sm:$0xf]
    %v230 = vld [vmem:[#allocation8 + $0x2c] sm:$0xf]
    %v231 = vld [vmem:[#allocation8 + $0x30] sm:$0xf]
    %v232 = vld [vmem:[#allocation8 + $0x34] sm:$0xf]
    %v233 = vld [vmem:[#allocation8 + $0x38] sm:$0xf]
    %v234 = vld [vmem:[#allocation8 + $0x3c] sm:$0xf]
    %v235 = vld [vmem:[#allocation10] sm:$0x1]
    %v237 = vlaneseq
    %v238 = vshrl.u32 %v237, 7
    %v239 = vsub.s32 0, %v238
    %v240 = vrot.slane %v235, %v239
    %v258 = vunpack.c.l.b16 %v219
    %v259 = vunpack.c.l.b16 %v220
    %v260 = vunpack.c.l.b16 %v221
    %v261 = vunpack.c.l.b16 %v222
    %v262 = vunpack.c.l.b16 %v223
    %v263 = vunpack.c.l.b16 %v224
    %v264 = vunpack.c.l.b16 %v225
    %v265 = vunpack.c.l.b16 %v226
    %v266 = vunpack.c.l.b16 %v227
    %v267 = vunpack.c.l.b16 %v228
    %v268 = vunpack.c.l.b16 %v229
    %v269 = vunpack.c.l.b16 %v230
    %v270 = vunpack.c.l.b16 %v231
    %v271 = vunpack.c.l.b16 %v232
    %v272 = vunpack.c.l.b16 %v233
    %v273 = vunpack.c.l.b16 %v234
    %v274 = vpack.c.b16 %v259, %v258
    %v275 = vpack.c.b16 %v261, %v260
    %v276 = vpack.c.b16 %v263, %v262
    %v277 = vpack.c.b16 %v265, %v264
    %v278 = vpack.c.b16 %v267, %v266
    %v279 = vpack.c.b16 %v269, %v268
    %v280 = vpack.c.b16 %v271, %v270
    %v281 = vpack.c.b16 %v273, %v272
    %290 = vmatprep.subr.bf16.mxu0 0
    %291 = vmatpush1.bf16.msra.mxu0 %v274
    %292 = vmatprep.subr.bf16.mxu0 0
    %293 = vmatpush1.bf16.msra.mxu0 %v275
    %294 = vmatprep.subr.bf16.mxu0 0
    %295 = vmatpush1.bf16.msra.mxu0 %v276
    %296 = vmatprep.subr.bf16.mxu0 0
    %297 = vmatpush1.bf16.msra.mxu0 %v277
    %298 = vmatprep.subr.bf16.mxu0 0
    %299 = vmatpush1.bf16.msra.mxu0 %v278
    %300 = vmatprep.subr.bf16.mxu0 0
    %301 = vmatpush1.bf16.msra.mxu0 %v279
    %302 = vmatprep.subr.bf16.mxu0 0
    %303 = vmatpush1.bf16.msra.mxu0 %v280
    %304 = vmatprep.subr.bf16.mxu0 0
    %305 = vmatpush1.bf16.msra.mxu0 %v281
    %306 = vmatprep.subr.bf16.mxu0 0
    %307 = vmatpush1.bf16.msra.mxu0 0
    %308 = vmatprep.subr.bf16.mxu0 0
    %309 = vmatpush1.bf16.msra.mxu0 0
    %310 = vmatprep.subr.bf16.mxu0 0
    %311 = vmatpush1.bf16.msra.mxu0 0
    %312 = vmatprep.subr.bf16.mxu0 0
    %313 = vmatpush1.bf16.msra.mxu0 0
    %314 = vmatprep.subr.bf16.mxu0 0
    %315 = vmatpush1.bf16.msra.mxu0 0
    %316 = vmatprep.subr.bf16.mxu0 0
    %317 = vmatpush1.bf16.msra.mxu0 0
    %318 = vmatprep.subr.bf16.mxu0 0
    %319 = vmatpush1.bf16.msra.mxu0 0
    %320 = vmatprep.subr.bf16.mxu0 0
    %321 = vmatpush1.bf16.msra.mxu0 0
    %322 = vmatprep.mubr.bf16.mxu0 0
    %323 = vmatmul.mubr.bf16.gmra.mrb[0].mxu0 %v218
    %v324 = vpop.f32.mrb[0].mxu0
    %v325 = vadd.f32 %v240, %v324
    %v326 = vpop.f32.mrb[0].mxu0
    %v327 = vpop.f32.mrb[0].mxu0
    %v328 = vpop.f32.mrb[0].mxu0
    %329 = vdwg.mxu0
    %v330 = vmax.f32 %v325, 0.0
    %v331 = vpack.c.bf16 %v330, %v330
    %v332 = vld [vmem:[#allocation11] sm:$0xf]
    %v333 = vld [vmem:[#allocation11 + $0x4] sm:$0xf]
    %v334 = vld [vmem:[#allocation11 + $0x8] sm:$0xf]
    %v335 = vld [vmem:[#allocation11 + $0xc] sm:$0xf]
    %v336 = vld [vmem:[#allocation11 + $0x10] sm:$0xf]
    %v337 = vld [vmem:[#allocation11 + $0x14] sm:$0xf]
    %v338 = vld [vmem:[#allocation11 + $0x18] sm:$0xf]
    %v339 = vld [vmem:[#allocation11 + $0x1c] sm:$0xf]
    %v340 = vld [vmem:[#allocation11 + $0x20] sm:$0xf]
    %v341 = vld [vmem:[#allocation11 + $0x24] sm:$0xf]
    %v342 = vld [vmem:[#allocation11 + $0x28] sm:$0xf]
    %v343 = vld [vmem:[#allocation11 + $0x2c] sm:$0xf]
    %v344 = vld [vmem:[#allocation11 + $0x30] sm:$0xf]
    %v345 = vld [vmem:[#allocation11 + $0x34] sm:$0xf]
    %v346 = vld [vmem:[#allocation11 + $0x38] sm:$0xf]
    %v347 = vld [vmem:[#allocation11 + $0x3c] sm:$0xf]
    %v348 = vld [vmem:[#allocation13] sm:$0x1]
    %v350 = vlaneseq
    %v351 = vshrl.u32 %v350, 7
    %v352 = vsub.s32 0, %v351
    %v353 = vrot.slane %v348, %v352
    %v371 = vunpack.c.l.b16 %v332
    %v372 = vunpack.c.l.b16 %v333
    %v373 = vunpack.c.l.b16 %v334
    %v374 = vunpack.c.l.b16 %v335
    %v375 = vunpack.c.l.b16 %v336
    %v376 = vunpack.c.l.b16 %v337
    %v377 = vunpack.c.l.b16 %v338
    %v378 = vunpack.c.l.b16 %v339
    %v379 = vunpack.c.l.b16 %v340
    %v380 = vunpack.c.l.b16 %v341
    %v381 = vunpack.c.l.b16 %v342
    %v382 = vunpack.c.l.b16 %v343
    %v383 = vunpack.c.l.b16 %v344
    %v384 = vunpack.c.l.b16 %v345
    %v385 = vunpack.c.l.b16 %v346
    %v386 = vunpack.c.l.b16 %v347
    %v387 = vpack.c.b16 %v372, %v371
    %v388 = vpack.c.b16 %v374, %v373
    %v389 = vpack.c.b16 %v376, %v375
    %v390 = vpack.c.b16 %v378, %v377
    %v391 = vpack.c.b16 %v380, %v379
    %v392 = vpack.c.b16 %v382, %v381
    %v393 = vpack.c.b16 %v384, %v383
    %v394 = vpack.c.b16 %v386, %v385
    %403 = vmatprep.subr.bf16.mxu0 0
    %404 = vmatpush1.bf16.msra.mxu0 %v387
    %405 = vmatprep.subr.bf16.mxu0 0
    %406 = vmatpush1.bf16.msra.mxu0 %v388
    %407 = vmatprep.subr.bf16.mxu0 0
    %408 = vmatpush1.bf16.msra.mxu0 %v389
    %409 = vmatprep.subr.bf16.mxu0 0
    %410 = vmatpush1.bf16.msra.mxu0 %v390
    %411 = vmatprep.subr.bf16.mxu0 0
    %412 = vmatpush1.bf16.msra.mxu0 %v391
    %413 = vmatprep.subr.bf16.mxu0 0
    %414 = vmatpush1.bf16.msra.mxu0 %v392
    %415 = vmatprep.subr.bf16.mxu0 0
    %416 = vmatpush1.bf16.msra.mxu0 %v393
    %417 = vmatprep.subr.bf16.mxu0 0
    %418 = vmatpush1.bf16.msra.mxu0 %v394
    %419 = vmatprep.subr.bf16.mxu0 0
    %420 = vmatpush1.bf16.msra.mxu0 0
    %421 = vmatprep.subr.bf16.mxu0 0
    %422 = vmatpush1.bf16.msra.mxu0 0
    %423 = vmatprep.subr.bf16.mxu0 0
    %424 = vmatpush1.bf16.msra.mxu0 0
    %425 = vmatprep.subr.bf16.mxu0 0
    %426 = vmatpush1.bf16.msra.mxu0 0
    %427 = vmatprep.subr.bf16.mxu0 0
    %428 = vmatpush1.bf16.msra.mxu0 0
    %429 = vmatprep.subr.bf16.mxu0 0
    %430 = vmatpush1.bf16.msra.mxu0 0
    %431 = vmatprep.subr.bf16.mxu0 0
    %432 = vmatpush1.bf16.msra.mxu0 0
    %433 = vmatprep.subr.bf16.mxu0 0
    %434 = vmatpush1.bf16.msra.mxu0 0
    %435 = vmatprep.mubr.bf16.mxu0 0
    %436 = vmatmul.mubr.bf16.gmra.mrb[0].mxu0 %v331
    %v437 = vpop.f32.mrb[0].mxu0
    %v438 = vadd.f32 %v353, %v437
    %v439 = vpop.f32.mrb[0].mxu0
    %v440 = vpop.f32.mrb[0].mxu0
    %v441 = vpop.f32.mrb[0].mxu0
    %442 = vdwg.mxu0
    %v443 = vld [vmem:[#allocation14] sm:$0xff]
    %v444 = vld [vmem:[#allocation14 + $0x8] sm:$0xff]
    %v445 = vld [vmem:[#allocation14 + $0x10] sm:$0xff]
    %v446 = vld [vmem:[#allocation14 + $0x18] sm:$0xff]
    %v448 = vsel %vm173, %v438, 0
    %450 = vmatprep.subr.mxu0 0.0
    %451 = vmatpush1.msra.mxu0 %v443
    %452 = vmatprep.subr.mxu0 0.0
    %453 = vmatpush1.msra.mxu0 %v444
    %454 = vmatprep.subr.mxu0 0.0
    %455 = vmatpush1.msra.mxu0 %v445
    %456 = vmatprep.subr.mxu0 0.0
    %457 = vmatpush1.msra.mxu0 %v446
    %458 = vmatprep.subr.mxu0 0.0
    %459 = vmatpush1.msra.mxu0 0.0
    %460 = vmatprep.subr.mxu0 0.0
    %461 = vmatpush1.msra.mxu0 0.0
    %462 = vmatprep.subr.mxu0 0.0
    %463 = vmatpush1.msra.mxu0 0.0
    %464 = vmatprep.subr.mxu0 0.0
    %465 = vmatpush1.msra.mxu0 0.0
    %466 = vmatprep.subr.mxu0 0.0
    %467 = vmatpush1.msra.mxu0 0.0
    %468 = vmatprep.subr.mxu0 0.0
    %469 = vmatpush1.msra.mxu0 0.0
    %470 = vmatprep.subr.mxu0 0.0
    %471 = vmatpush1.msra.mxu0 0.0
    %472 = vmatprep.subr.mxu0 0.0
    %473 = vmatpush1.msra.mxu0 0.0
    %474 = vmatprep.subr.mxu0 0.0
    %475 = vmatpush1.msra.mxu0 0.0
    %476 = vmatprep.subr.mxu0 0.0
    %477 = vmatpush1.msra.mxu0 0.0
    %478 = vmatprep.subr.mxu0 0.0
    %479 = vmatpush1.msra.mxu0 0.0
    %480 = vmatprep.subr.mxu0 0.0
    %481 = vmatpush1.msra.mxu0 0.0
    %482 = vmatprep.subr.mxu0 0.0
    %483 = vmatpush1.msra.mxu0 0.0
    %484 = vmatprep.subr.mxu0 0.0
    %485 = vmatpush1.msra.mxu0 0.0
    %486 = vmatprep.subr.mxu0 0.0
    %487 = vmatpush1.msra.mxu0 0.0
    %488 = vmatprep.subr.mxu0 0.0
    %489 = vmatpush1.msra.mxu0 0.0
    %490 = vmatprep.subr.mxu0 0.0
    %491 = vmatpush1.msra.mxu0 0.0
    %492 = vmatprep.subr.mxu0 0.0
    %493 = vmatpush1.msra.mxu0 0.0
    %494 = vmatprep.subr.mxu0 0.0
    %495 = vmatpush1.msra.mxu0 0.0
    %496 = vmatprep.subr.mxu0 0.0
    %497 = vmatpush1.msra.mxu0 0.0
    %498 = vmatprep.subr.mxu0 0.0
    %499 = vmatpush1.msra.mxu0 0.0
    %500 = vmatprep.subr.mxu0 0.0
    %501 = vmatpush1.msra.mxu0 0.0
    %502 = vmatprep.subr.mxu0 0.0
    %503 = vmatpush1.msra.mxu0 0.0
    %504 = vmatprep.subr.mxu0 0.0
    %505 = vmatpush1.msra.mxu0 0.0
    %506 = vmatprep.subr.mxu0 0.0
    %507 = vmatpush1.msra.mxu0 0.0
    %508 = vmatprep.subr.mxu0 0.0
    %509 = vmatpush1.msra.mxu0 0.0
    %510 = vmatprep.subr.mxu0 0.0
    %511 = vmatpush1.msra.mxu0 0.0
    %512 = vmatprep.subr.mxu0 0.0
    %513 = vmatpush1.msra.mxu0 0.0
    %514 = vmatprep.mubr.f32.mxu0 0.0
    %515 = vmatmul.mubr.f32.gmra.mrb[0].mxu0 %v448
    %v516 = vpop.f32.mrb[0].mxu0
    %v517 = vadd.f32 0.0, %v516
    %v518 = vpop.f32.mrb[0].mxu0
    %519 = vdwg.mxu0
    %v520 = vsub.f32 %v438, %v517
    %v521 = vmul.f32 %v520, %v520
    %v523 = vsel %vm173, %v521, 0
    %525 = vmatprep.subr.mxu0 0.0
    %526 = vmatpush1.msra.mxu0 %v443
    %527 = vmatprep.subr.mxu0 0.0
    %528 = vmatpush1.msra.mxu0 %v444
    %529 = vmatprep.subr.mxu0 0.0
    %530 = vmatpush1.msra.mxu0 %v445
    %531 = vmatprep.subr.mxu0 0.0
    %532 = vmatpush1.msra.mxu0 %v446
    %533 = vmatprep.subr.mxu0 0.0
    %534 = vmatpush1.msra.mxu0 0.0
    %535 = vmatprep.subr.mxu0 0.0
    %536 = vmatpush1.msra.mxu0 0.0
    %537 = vmatprep.subr.mxu0 0.0
    %538 = vmatpush1.msra.mxu0 0.0
    %539 = vmatprep.subr.mxu0 0.0
    %540 = vmatpush1.msra.mxu0 0.0
    %541 = vmatprep.subr.mxu0 0.0
    %542 = vmatpush1.msra.mxu0 0.0
    %543 = vmatprep.subr.mxu0 0.0
    %544 = vmatpush1.msra.mxu0 0.0
    %545 = vmatprep.subr.mxu0 0.0
    %546 = vmatpush1.msra.mxu0 0.0
    %547 = vmatprep.subr.mxu0 0.0
    %548 = vmatpush1.msra.mxu0 0.0
    %549 = vmatprep.subr.mxu0 0.0
    %550 = vmatpush1.msra.mxu0 0.0
    %551 = vmatprep.subr.mxu0 0.0
    %552 = vmatpush1.msra.mxu0 0.0
    %553 = vmatprep.subr.mxu0 0.0
    %554 = vmatpush1.msra.mxu0 0.0
    %555 = vmatprep.subr.mxu0 0.0
    %556 = vmatpush1.msra.mxu0 0.0
    %557 = vmatprep.subr.mxu0 0.0
    %558 = vmatpush1.msra.mxu0 0.0
    %559 = vmatprep.subr.mxu0 0.0
    %560 = vmatpush1.msra.mxu0 0.0
    %561 = vmatprep.subr.mxu0 0.0
    %562 = vmatpush1.msra.mxu0 0.0
    %563 = vmatprep.subr.mxu0 0.0
    %564 = vmatpush1.msra.mxu0 0.0
    %565 = vmatprep.subr.mxu0 0.0
    %566 = vmatpush1.msra.mxu0 0.0
    %567 = vmatprep.subr.mxu0 0.0
    %568 = vmatpush1.msra.mxu0 0.0
    %569 = vmatprep.subr.mxu0 0.0
    %570 = vmatpush1.msra.mxu0 0.0
    %571 = vmatprep.subr.mxu0 0.0
    %572 = vmatpush1.msra.mxu0 0.0
    %573 = vmatprep.subr.mxu0 0.0
    %574 = vmatpush1.msra.mxu0 0.0
    %575 = vmatprep.subr.mxu0 0.0
    %576 = vmatpush1.msra.mxu0 0.0
    %577 = vmatprep.subr.mxu0 0.0
    %578 = vmatpush1.msra.mxu0 0.0
    %579 = vmatprep.subr.mxu0 0.0
    %580 = vmatpush1.msra.mxu0 0.0
    %581 = vmatprep.subr.mxu0 0.0
    %582 = vmatpush1.msra.mxu0 0.0
    %583 = vmatprep.subr.mxu0 0.0
    %584 = vmatpush1.msra.mxu0 0.0
    %585 = vmatprep.subr.mxu0 0.0
    %586 = vmatpush1.msra.mxu0 0.0
    %587 = vmatprep.subr.mxu0 0.0
    %588 = vmatpush1.msra.mxu0 0.0
    %589 = vmatprep.mubr.f32.mxu0 0.0
    %590 = vmatmul.mubr.f32.gmra.mrb[0].mxu0 %v523
    %v591 = vpop.f32.mrb[0].mxu0
    %v592 = vadd.f32 0.0, %v591
    %v593 = vpop.f32.mrb[0].mxu0
    %594 = vdwg.mxu0
    %v595 = vrsqrt.pop %v592
    %v596 = vmul.f32 %v520, %v595
    %v597 = vmul.f32 %v596, 1.442695
    %v598 = vpow.pop %v597
    %v599 = vld [vmem:[#allocation16] sm:$0xff]
    %v600 = vld [vmem:[#allocation16 + $0x8] sm:$0xff]
    %v601 = vld [vmem:[#allocation16 + $0x10] sm:$0xff]
    %v602 = vld [vmem:[#allocation16 + $0x18] sm:$0xff]
    %v604 = vsel %vm173, %v598, 0
    %606 = vmatprep.subr.mxu0 0.0
    %607 = vmatpush1.msra.mxu0 %v599
    %608 = vmatprep.subr.mxu0 0.0
    %609 = vmatpush1.msra.mxu0 %v600
    %610 = vmatprep.subr.mxu0 0.0
    %611 = vmatpush1.msra.mxu0 %v601
    %612 = vmatprep.subr.mxu0 0.0
    %613 = vmatpush1.msra.mxu0 %v602
    %614 = vmatprep.subr.mxu0 0.0
    %615 = vmatpush1.msra.mxu0 0.0
    %616 = vmatprep.subr.mxu0 0.0
    %617 = vmatpush1.msra.mxu0 0.0
    %618 = vmatprep.subr.mxu0 0.0
    %619 = vmatpush1.msra.mxu0 0.0
    %620 = vmatprep.subr.mxu0 0.0
    %621 = vmatpush1.msra.mxu0 0.0
    %622 = vmatprep.subr.mxu0 0.0
    %623 = vmatpush1.msra.mxu0 0.0
    %624 = vmatprep.subr.mxu0 0.0
    %625 = vmatpush1.msra.mxu0 0.0
    %626 = vmatprep.subr.mxu0 0.0
    %627 = vmatpush1.msra.mxu0 0.0
    %628 = vmatprep.subr.mxu0 0.0
    %629 = vmatpush1.msra.mxu0 0.0
    %630 = vmatprep.subr.mxu0 0.0
    %631 = vmatpush1.msra.mxu0 0.0
    %632 = vmatprep.subr.mxu0 0.0
    %633 = vmatpush1.msra.mxu0 0.0
    %634 = vmatprep.subr.mxu0 0.0
    %635 = vmatpush1.msra.mxu0 0.0
    %636 = vmatprep.subr.mxu0 0.0
    %637 = vmatpush1.msra.mxu0 0.0
    %638 = vmatprep.subr.mxu0 0.0
    %639 = vmatpush1.msra.mxu0 0.0
    %640 = vmatprep.subr.mxu0 0.0
    %641 = vmatpush1.msra.mxu0 0.0
    %642 = vmatprep.subr.mxu0 0.0
    %643 = vmatpush1.msra.mxu0 0.0
    %644 = vmatprep.subr.mxu0 0.0
    %645 = vmatpush1.msra.mxu0 0.0
    %646 = vmatprep.subr.mxu0 0.0
    %647 = vmatpush1.msra.mxu0 0.0
    %648 = vmatprep.subr.mxu0 0.0
    %649 = vmatpush1.msra.mxu0 0.0
    %650 = vmatprep.subr.mxu0 0.0
    %651 = vmatpush1.msra.mxu0 0.0
    %652 = vmatprep.subr.mxu0 0.0
    %653 = vmatpush1.msra.mxu0 0.0
    %654 = vmatprep.subr.mxu0 0.0
    %655 = vmatpush1.msra.mxu0 0.0
    %656 = vmatprep.subr.mxu0 0.0
    %657 = vmatpush1.msra.mxu0 0.0
    %658 = vmatprep.subr.mxu0 0.0
    %659 = vmatpush1.msra.mxu0 0.0
    %660 = vmatprep.subr.mxu0 0.0
    %661 = vmatpush1.msra.mxu0 0.0
    %662 = vmatprep.subr.mxu0 0.0
    %663 = vmatpush1.msra.mxu0 0.0
    %664 = vmatprep.subr.mxu0 0.0
    %665 = vmatpush1.msra.mxu0 0.0
    %666 = vmatprep.subr.mxu0 0.0
    %667 = vmatpush1.msra.mxu0 0.0
    %668 = vmatprep.subr.mxu0 0.0
    %669 = vmatpush1.msra.mxu0 0.0
    %670 = vmatprep.mubr.f32.mxu0 0.0
    %671 = vmatmul.mubr.f32.gmra.mrb[0].mxu0 %v604
    %v672 = vpop.f32.mrb[0].mxu0
    %v673 = vadd.f32 0.0, %v672
    %v674 = vpop.f32.mrb[0].mxu0
    %675 = vdwg.mxu0
    %v676 = vrcp.pop %v673
    %v677 = vmul.f32 %v598, %v676
    %678 = vst.msk [vmem:[#allocation17] sm:$0xff] %vm173, %v677
    // Predicated region
    $region74: #{tpu_custom_call.1} parent=1 // pred_check
      _
    $region75: #{tpu_custom_call.1} parent=1 // pred_check_branch
      %680 = sbr.rel (0) target = $region77
    $region76: #{tpu_custom_call.1} parent=1 // pred_region
      %s682 = ssub.s32 128, 128
      %683 = vsyncadd [#allocation4], %s682
      %s685 = sshll.u32 [#allocation17], 4
      %s686 = int_to_ptr.vmem [resolvable:$true] %s685
      %688 = dma.vmem_to_hbm [thread:$0]  %s686, 128, %s9, [#allocation4]
    $region77: #{tpu_custom_call.1} parent=1 // pred_fallthru
      _
    // Predicated region
    $region78: #{tpu_custom_call.1} parent=1 // pred_check
      _
    $region79: #{tpu_custom_call.1} parent=1 // pred_check_branch
      %690 = sbr.rel (0) target = $region81
    $region80: #{tpu_custom_call.1} parent=1 // pred_region
      %691 = dma.done [#allocation4], 128
    $region81: #{tpu_custom_call.1} parent=1 // pred_fallthru
      _
    %692 = vsyncpa [#allocation3], 1
    %693 = vsyncpa [#allocation6], 1
    %694 = vsyncpa [#allocation9], 1
    %695 = vsyncpa [#allocation12], 1
    %696 = vsyncpa [#allocation15], 1
    %697 = vsyncpa [#allocation4], 1

</llo_original>
